<compile_context>
chip_gen: v5e
topology: v5e:2x2
jax: 0.10.0
libtpu: 0.0.40
codegen_flags: <defaults>
</compile_context>

<pallas_src>
import functools

import jax
import jax.numpy as jnp
from jax.experimental import pallas as pl
from jax.experimental.pallas import tpu as pltpu

HEADS = 8
DIM_HEAD = 32
INNER = HEADS * DIM_HEAD  # 256


# ---------------------------------------------------------------------------
# Tiling / VMEM planning
# ---------------------------------------------------------------------------
def _vmem_plan():
    """Return (tile_budget_bytes, vmem_limit_bytes), conservative across v5e/v6e/v7x."""
    phys = 64 << 20  # v7x floor (smallest physical VMEM per TensorCore)
    try:
        info = pltpu.get_tpu_info()
        phys = int(getattr(info, "vmem_capacity_bytes", phys))
    except Exception:
        pass
    limit = max(min(phys - (16 << 20), 96 << 20), 32 << 20)  # headroom below physical
    budget = int(limit * 0.6)  # double-buffered outputs + f32 temps must fit the limit
    return budget, limit


def _plan_tiles(bx, by, d, out_elem_bytes, budget_bytes):
    """Pick (tb, tby): tb | bx (multiple of 8 when possible), tby | by with tby*d a
    multiple of 128 when possible (lane-dense output slabs).  Per-step VMEM estimate:
    2 outputs x 2 pipeline buffers + ~3 lane-tiled f32 temps."""
    if bx % 8 == 0 and bx >= 8:
        tb_cands = sorted({t for t in range(8, bx + 1, 8) if bx % t == 0}, reverse=True)
    else:
        tb_cands = [bx]  # full extent (allowed by the BlockSpec full-dim exception)
    tby_cands = sorted(
        {t for t in range(1, by + 1) if by % t == 0 and (t * d) % 128 == 0} | {by},
        reverse=True)

    def footprint(tb, tby):
        out_bytes = 2 * 2 * tb * tby * d * out_elem_bytes
        tmp_bytes = 3 * tb * tby * d * 4
        return out_bytes + tmp_bytes

    best = None
    for tby in tby_cands:
        for tb in tb_cands:
            if footprint(tb, tby) <= budget_bytes:
                key = (tb * tby, tby * d)  # maximize tile area, then slab lane-width
                if best is None or key > best[0]:
                    best = (key, (tb, tby))
    tb, tby = best[1] if best is not None else (tb_cands[-1], tby_cands[-1])

    # Guarantee >= 2 grid steps so both v7x TensorCores get work (free ~2x there).
    if (bx // tb) * (by // tby) == 1:
        smaller_tby = [t for t in tby_cands if t < tby]
        smaller_tb = [t for t in tb_cands if t < tb]
        if smaller_tby:
            tby = smaller_tby[0]
        elif smaller_tb:
            tb = smaller_tb[0]
    return tb, tby


# ---------------------------------------------------------------------------
# Fused kernel: collapsed cross-attention gate (x side) + broadcast fusion.
# ---------------------------------------------------------------------------
def _lane_tile(v, rep):
    """Replicate (tb, d) -> (tb, rep*d) along lanes with O(log rep) concatenates."""
    if rep == 1:
        return v
    parts = []
    cur = v
    r = rep
    while True:
        if r & 1:
            parts.append(cur)
        r >>= 1
        if not r:
            break
        cur = jnp.concatenate([cur, cur], axis=-1)
    return parts[0] if len(parts) == 1 else jnp.concatenate(parts, axis=-1)


def _fused_kernel(x_ref, w1_ref, b1_ref, y_ref, gy_ref, hy_ref, xf_ref, yf_ref, *, rep):
    # Collapsed Cross_Attention 1 for this x-row tile.  Recomputed per step: the kernel
    # is HBM-store bound, so the tiny MXU/EUP work is free and avoids extra narrow DMAs.
    x = x_ref[...].astype(jnp.float32)                                   # (tb, d)
    xc = jnp.dot(x, w1_ref[...], preferred_element_type=jnp.float32) + b1_ref[...]
    sxc = jax.nn.sigmoid(xc)

    x_t = _lane_tile(x, rep)                                             # (tb, rep*d)
    xc_t = _lane_tile(xc, rep)
    sxc_t = _lane_tile(sxc, rep)

    y_row = y_ref[...]                                                   # (1, rep*d) f32
    gy = gy_ref[...]                                                     # sigmoid(yc)+sigmoid(y)
    hy = hy_ref[...]                                                     # 1+sigmoid(yc)

    # x_final[i,j] = x[i] + (sigmoid(yc[j]) + sigmoid(y[j])) * xc[i]
    xf_ref[...] = (x_t + gy * xc_t).astype(xf_ref.dtype)
    # y_final[i,j] = y[j] * (1 + sigmoid(yc[j]) + sigmoid(xc[i]))
    yf_ref[...] = (y_row * (hy + sxc_t)).astype(yf_ref.dtype)


# ---------------------------------------------------------------------------
# CrossLearning forward
# ---------------------------------------------------------------------------
def cross_learning_forward(x, y, params1, params2, *, out_dtype=None):
    bx, d = x.shape
    by, d2 = y.shape
    assert d == d2
    nd = by * d
    # NOTE: on store-bound v5e, out_dtype=jnp.bfloat16 halves output bytes (downstream
    # permitting).  Default matches the module (input dtype) for exactness.
    out_dtype = jnp.dtype(out_dtype) if out_dtype is not None else jnp.dtype(x.dtype)

    f32 = jnp.float32
    # Fold the collapsed-attention weight chains: to_out(to_v(row)) == row @ (Wv@Wo) + bo.
    w1 = params1["wv"].astype(f32) @ params1["wo"].astype(f32)           # (d, d)
    b1 = params1["bo"].astype(f32).reshape(1, d)
    w2 = params2["wv"].astype(f32) @ params2["wo"].astype(f32)
    b2 = params2["bo"].astype(f32).reshape(1, d)

    # y-side gates: tiny ((by, d)), plain jnp (XLA fuses); flattened lane-dense (free
    # HBM reshape) so the kernel needs no in-kernel relayout for per-y operands.
    y32 = y.astype(f32)
    yc = y32 @ w2 + b2
    syc = jax.nn.sigmoid(yc)
    gy_f = (syc + jax.nn.sigmoid(y32)).reshape(1, nd)
    hy_f = (1.0 + syc).reshape(1, nd)
    y_f = y32.reshape(1, nd)

    budget, vmem_limit = _vmem_plan()
    tb, tby = _plan_tiles(bx, by, d, out_dtype.itemsize, budget)
    tnd = tby * d
    grid = (bx // tb, by // tby)

    cost = pl.CostEstimate(
        flops=int(2 * bx * d * d * grid[1] + 6 * bx * nd),
        transcendentals=int(bx * d * grid[1]),
        bytes_accessed=int(2 * bx * nd * out_dtype.itemsize
                           + (bx * d + 3 * nd * grid[0] + d * d + 2 * d) * 4),
    )

    kernel = functools.partial(_fused_kernel, rep=tby)
    xf, yf = pl.pallas_call(
        kernel,
        out_shape=(jax.ShapeDtypeStruct((bx, nd), out_dtype),
                   jax.ShapeDtypeStruct((bx, nd), out_dtype)),
        grid=grid,
        in_specs=[
            pl.BlockSpec((tb, d), lambda i, j: (i, 0)),      # x rows
            pl.BlockSpec((d, d), lambda i, j: (0, 0)),       # folded Wv1@Wo1
            pl.BlockSpec((1, d), lambda i, j: (0, 0)),       # bo1
            pl.BlockSpec((1, tnd), lambda i, j: (0, j)),     # y (lane-dense flat)
            pl.BlockSpec((1, tnd), lambda i, j: (0, j)),     # sigmoid(yc)+sigmoid(y)
            pl.BlockSpec((1, tnd), lambda i, j: (0, j)),     # 1+sigmoid(yc)
        ],
        out_specs=(pl.BlockSpec((tb, tnd), lambda i, j: (i, j)),
                   pl.BlockSpec((tb, tnd), lambda i, j: (i, j))),
        compiler_params=pltpu.CompilerParams(
            dimension_semantics=("parallel", "parallel"),
            vmem_limit_bytes=vmem_limit),
        cost_estimate=cost,
    )(x, w1, b1, y_f, gy_f, hy_f)
    return xf.reshape(bx, by, d), yf.reshape(bx, by, d)


# ---------------------------------------------------------------------------
# Pure-JAX *full attention* reference (mirrors the PyTorch module exactly) —
# used to verify that the algebraic collapse is semantically identical.
# ---------------------------------------------------------------------------
def _ref_cross_attention(x, m, p, heads=HEADS, dim_head=DIM_HEAD):
    b, n, d = x.shape
    scale = float(d) ** -0.5            # module uses dim**-0.5 (not dim_head)
    q = x @ p["wq"]
    k = m @ p["wk"]
    v = m @ p["wv"]

    def split(t):
        return t.reshape(b, n, heads, dim_head).transpose(0, 2, 1, 3)

    q, k, v = split(q), split(k), split(v)
    dots = jnp.einsum("bhid,bhjd->bhij", q, k) * scale
    attn = jax.nn.softmax(dots, axis=-1)
    out = jnp.einsum("bhij,bhjd->bhid", attn, v)
    out = out.transpose(0, 2, 1, 3).reshape(b, n, heads * dim_head)
    return out @ p["wo"] + p["bo"]


def _ref_cross_learning(x, y, p1, p2):
    bx, d = x.shape
    by, _ = y.shape
    x_1 = jnp.broadcast_to(x[:, None, :], (bx, by, d))
    y_1 = jnp.broadcast_to(y[None, :, :], (bx, by, d))
    x_2 = jnp.broadcast_to(x[None, :, :], (by, bx, d))
    y_2 = jnp.broadcast_to(y[:, None, :], (by, bx, d))
    x_cross = _ref_cross_attention(y_1, x_1, p1)
    y_cross = _ref_cross_attention(x_2, y_2, p2).transpose(1, 0, 2)
    x_final = x_1 + jax.nn.sigmoid(y_cross) * x_cross + jax.nn.sigmoid(y_1) * x_cross
    y_final = y_1 + jax.nn.sigmoid(y_cross) * y_1 + jax.nn.sigmoid(x_cross) * y_1
    return x_final, y_final


# ---------------------------------------------------------------------------
# Deterministic parameter init (PyTorch-Linear-style uniform bounds).
# wq/wk are kept only for the full-attention reference; the collapsed kernel
# provably does not depend on them.
# ---------------------------------------------------------------------------
def init_attn_params(key, dim, heads=HEADS, dim_head=DIM_HEAD):
    inner = heads * dim_head
    ks = jax.random.split(key, 5)

    def lin(rng, fan_in, shape):
        bound = 1.0 / (fan_in ** 0.5)
        return jax.random.uniform(rng, shape, jnp.float32, -bound, bound)

    return {
        "wq": lin(ks[0], dim, (dim, inner)),     # to_q (bias=False)  [unused by kernel]
        "wk": lin(ks[1], dim, (dim, inner)),     # to_k (bias=False)  [unused by kernel]
        "wv": lin(ks[2], dim, (dim, inner)),     # to_v (bias=False)
        "wo": lin(ks[3], inner, (inner, dim)),   # to_out[0] weight
        "bo": lin(ks[4], inner, (1, dim)),       # to_out[0] bias
        # Dropout(0.0) in to_out is identity at inference -> omitted.
    }


if __name__ == "__main__":
    embed_dim = 32
    batch_x, batch_y = 8, 16

    key = jax.random.PRNGKey(0)
    kx, ky, kp1, kp2 = jax.random.split(key, 4)
    x = jax.random.normal(kx, (batch_x, embed_dim), jnp.float32)
    y = jax.random.normal(ky, (batch_y, embed_dim), jnp.float32)
    params1 = init_attn_params(kp1, embed_dim)
    params2 = init_attn_params(kp2, embed_dim)

    x_final, y_final = cross_learning_forward(x, y, params1, params2)
    jax.block_until_ready((x_final, y_final))

    # Verify against the full (non-collapsed) attention reference.
    x_ref, y_ref = _ref_cross_learning(x, y, params1, params2)
    assert x_final.shape == (batch_x, batch_y, embed_dim)
    assert y_final.shape == (batch_x, batch_y, embed_dim)
    assert jnp.allclose(x_final, x_ref, atol=1e-3, rtol=1e-3)
    assert jnp.allclose(y_final, y_ref, atol=1e-3, rtol=1e-3)

    print("KERNEL_OK")
</pallas_src>

<mosaic_0001>
module attributes {stable_mosaic.version = 11 : i64} {
  func.func @_fused_kernel(%arg0: i32, %arg1: i32, %arg2: memref<8x32xf32, #tpu.memory_space<vmem>>, %arg3: memref<32x32xf32, #tpu.memory_space<vmem>>, %arg4: memref<1x32xf32, #tpu.memory_space<vmem>>, %arg5: memref<1x256xf32, #tpu.memory_space<vmem>>, %arg6: memref<1x256xf32, #tpu.memory_space<vmem>>, %arg7: memref<1x256xf32, #tpu.memory_space<vmem>>, %arg8: memref<8x256xf32, #tpu.memory_space<vmem>>, %arg9: memref<8x256xf32, #tpu.memory_space<vmem>>) attributes {dimension_semantics = [#tpu.dimension_semantics<parallel>, #tpu.dimension_semantics<parallel>], iteration_bounds = array<i64: 1, 2>, scalar_prefetch = 0 : i64, scratch_operands = 0 : i64, tpu.core_type = #tpu.core_type<tc>, window_params = [{transform_indices = @transform_0, window_bounds = array<i64: 8, 32>}, {pipeline_mode = #tpu.pipeline_mode<synchronous>, transform_indices = @transform_1, window_bounds = array<i64: 32, 32>}, {pipeline_mode = #tpu.pipeline_mode<synchronous>, transform_indices = @transform_2, window_bounds = array<i64: 1, 32>}, {transform_indices = @transform_3, window_bounds = array<i64: 1, 256>}, {transform_indices = @transform_4, window_bounds = array<i64: 1, 256>}, {transform_indices = @transform_5, window_bounds = array<i64: 1, 256>}, {transform_indices = @transform_6, window_bounds = array<i64: 8, 256>}, {transform_indices = @transform_7, window_bounds = array<i64: 8, 256>}]} {
    %c0 = arith.constant 0 : index
    %c0_0 = arith.constant 0 : index
    %0 = vector.load %arg2[%c0, %c0_0] : memref<8x32xf32, #tpu.memory_space<vmem>>, vector<8x32xf32>
    %c0_1 = arith.constant 0 : index
    %c0_2 = arith.constant 0 : index
    %1 = vector.load %arg3[%c0_1, %c0_2] : memref<32x32xf32, #tpu.memory_space<vmem>>, vector<32x32xf32>
    %cst = arith.constant dense<0.000000e+00> : vector<8x32xf32>
    %2 = tpu.matmul %0, %1, %cst {dimension_numbers = #tpu.dot_dimension_numbers<[1], [0], [0], [1], [0, 0, 1, 1], [], []>} : vector<8x32xf32>, vector<32x32xf32>, vector<8x32xf32> -> vector<8x32xf32>
    %c0_3 = arith.constant 0 : index
    %c0_4 = arith.constant 0 : index
    %3 = vector.load %arg4[%c0_3, %c0_4] : memref<1x32xf32, #tpu.memory_space<vmem>>, vector<1x32xf32>
    %4 = vector.broadcast %3 : vector<1x32xf32> to vector<8x32xf32>
    %5 = arith.addf %2, %4 : vector<8x32xf32>
    %6 = arith.negf %5 : vector<8x32xf32>
    %7 = math.exp %6 : vector<8x32xf32>
    %cst_5 = arith.constant 1.000000e+00 : f32
    %8 = vector.broadcast %cst_5 : f32 to vector<8x32xf32>
    %9 = arith.addf %8, %7 : vector<8x32xf32>
    %10 = arith.divf %8, %9 : vector<8x32xf32>
    %11 = tpu.concatenate %0, %0 in 1 : vector<8x32xf32>, vector<8x32xf32> -> vector<8x64xf32>
    %12 = tpu.concatenate %11, %11 in 1 : vector<8x64xf32>, vector<8x64xf32> -> vector<8x128xf32>
    %13 = tpu.concatenate %12, %12 in 1 : vector<8x128xf32>, vector<8x128xf32> -> vector<8x256xf32>
    %14 = tpu.concatenate %5, %5 in 1 : vector<8x32xf32>, vector<8x32xf32> -> vector<8x64xf32>
    %15 = tpu.concatenate %14, %14 in 1 : vector<8x64xf32>, vector<8x64xf32> -> vector<8x128xf32>
    %16 = tpu.concatenate %15, %15 in 1 : vector<8x128xf32>, vector<8x128xf32> -> vector<8x256xf32>
    %17 = tpu.concatenate %10, %10 in 1 : vector<8x32xf32>, vector<8x32xf32> -> vector<8x64xf32>
    %18 = tpu.concatenate %17, %17 in 1 : vector<8x64xf32>, vector<8x64xf32> -> vector<8x128xf32>
    %19 = tpu.concatenate %18, %18 in 1 : vector<8x128xf32>, vector<8x128xf32> -> vector<8x256xf32>
    %c0_6 = arith.constant 0 : index
    %c0_7 = arith.constant 0 : index
    %20 = vector.load %arg5[%c0_6, %c0_7] : memref<1x256xf32, #tpu.memory_space<vmem>>, vector<1x256xf32>
    %c0_8 = arith.constant 0 : index
    %c0_9 = arith.constant 0 : index
    %21 = vector.load %arg6[%c0_8, %c0_9] : memref<1x256xf32, #tpu.memory_space<vmem>>, vector<1x256xf32>
    %c0_10 = arith.constant 0 : index
    %c0_11 = arith.constant 0 : index
    %22 = vector.load %arg7[%c0_10, %c0_11] : memref<1x256xf32, #tpu.memory_space<vmem>>, vector<1x256xf32>
    %23 = vector.broadcast %21 : vector<1x256xf32> to vector<8x256xf32>
    %24 = arith.mulf %23, %16 : vector<8x256xf32>
    %25 = arith.addf %13, %24 : vector<8x256xf32>
    %c0_12 = arith.constant 0 : index
    %c0_13 = arith.constant 0 : index
    %26 = vector.load %arg8[%c0_12, %c0_13] : memref<8x256xf32, #tpu.memory_space<vmem>>, vector<8x256xf32>
    tpu.vector_store %arg8[%c0_12, %c0_13], %25 {strides = array<i32>} : memref<8x256xf32, #tpu.memory_space<vmem>>, vector<8x256xf32>,
    %27 = vector.broadcast %22 : vector<1x256xf32> to vector<8x256xf32>
    %28 = arith.addf %27, %19 : vector<8x256xf32>
    %29 = vector.broadcast %20 : vector<1x256xf32> to vector<8x256xf32>
    %30 = arith.mulf %29, %28 : vector<8x256xf32>
    %c0_14 = arith.constant 0 : index
    %c0_15 = arith.constant 0 : index
    %31 = vector.load %arg9[%c0_14, %c0_15] : memref<8x256xf32, #tpu.memory_space<vmem>>, vector<8x256xf32>
    tpu.vector_store %arg9[%c0_14, %c0_15], %30 {strides = array<i32>} : memref<8x256xf32, #tpu.memory_space<vmem>>, vector<8x256xf32>,
    return
  }
  func.func @transform_0(%arg0: i32, %arg1: i32) -> (i32, i32) {
    %c0_i32 = arith.constant 0 : i32
    %c0_i32_0 = arith.constant 0 : i32
    return %arg0, %c0_i32 : i32, i32
  }
  func.func @transform_1(%arg0: i32, %arg1: i32) -> (i32, i32) {
    %c0_i32 = arith.constant 0 : i32
    %c0_i32_0 = arith.constant 0 : i32
    %c0_i32_1 = arith.constant 0 : i32
    return %c0_i32, %c0_i32_0 : i32, i32
  }
  func.func @transform_2(%arg0: i32, %arg1: i32) -> (i32, i32) {
    %c0_i32 = arith.constant 0 : i32
    %c0_i32_0 = arith.constant 0 : i32
    %c0_i32_1 = arith.constant 0 : i32
    return %c0_i32, %c0_i32_0 : i32, i32
  }
  func.func @transform_3(%arg0: i32, %arg1: i32) -> (i32, i32) {
    %c0_i32 = arith.constant 0 : i32
    %c0_i32_0 = arith.constant 0 : i32
    return %c0_i32, %arg1 : i32, i32
  }
  func.func @transform_4(%arg0: i32, %arg1: i32) -> (i32, i32) {
    %c0_i32 = arith.constant 0 : i32
    %c0_i32_0 = arith.constant 0 : i32
    return %c0_i32, %arg1 : i32, i32
  }
  func.func @transform_5(%arg0: i32, %arg1: i32) -> (i32, i32) {
    %c0_i32 = arith.constant 0 : i32
    %c0_i32_0 = arith.constant 0 : i32
    return %c0_i32, %arg1 : i32, i32
  }
  func.func @transform_6(%arg0: i32, %arg1: i32) -> (i32, i32) {
    %c0_i32 = arith.constant 0 : i32
    return %arg0, %arg1 : i32, i32
  }
  func.func @transform_7(%arg0: i32, %arg1: i32) -> (i32, i32) {
    %c0_i32 = arith.constant 0 : i32
    return %arg0, %arg1 : i32, i32
  }
}

</mosaic_0001>

<llo_original>
// kernel: tpu_custom_call.1
$region0: #{tpu_custom_call.1}
  #allocation0 [shape = 'u32[]', space=smem, size = 0x4, offset = 0x4, fixed_abs, tag = 'smem constant byte address 0x4 - core index']
  #allocation1 [shape = 'u32[72,128]{1,0:T(1,128)}', space=vmem, size = 0x9000, scoped, tag = 'internal scratch']
  %s0 = inlined_call_operand.hbm [shape: f32[8,32], index: 0, kind: input, shape index: {}]
  %s1 = inlined_call_operand.hbm [shape: f32[32,32], index: 1, kind: input, shape index: {}]
  %s2 = inlined_call_operand.hbm [shape: f32[1,32], index: 2, kind: input, shape index: {}]
  %s3 = inlined_call_operand.hbm [shape: f32[1,512], index: 3, kind: input, shape index: {}]
  %s4 = inlined_call_operand.hbm [shape: f32[1,512], index: 4, kind: input, shape index: {}]
  %s5 = inlined_call_operand.vmem [shape: f32[1,512], index: 5, kind: input, shape index: {}]
  %s6 = inlined_call_operand.hbm [shape: f32[8,512], index: 6, kind: output, shape index: {0}]
  %s7 = inlined_call_operand.hbm [shape: f32[8,512], index: 7, kind: output, shape index: {1}]
  %8 = xla_tuple %s6, %s7
  %s9 = sld [smem:[#allocation0]]
  $region85: #{tpu_custom_call.1} parent=0
    _
  %s11 = ssub.s32 1, %s9
  %s12 = scalar_select 0, %s11, %s9
  $region1: #{tpu_custom_call.1} parent=0
    #allocation2 [shape = 'u8[4096]{0}', space=vmem, size = 0x1000, scoped, tag = 'input window, operand 0, single buffered']
    #allocation3 [shape = 's32[2]{0}', space=sflag, size = 0x8, scoped, tag = 'scoped memory for tpu_custom_call.1']
    #allocation4 [shape = 's32[2]{0}', space=sflag, size = 0x8, scoped, tag = 'scoped memory for tpu_custom_call.1']
    #allocation5 [shape = 'u8[16384]{0}', space=vmem, size = 0x4000, scoped, tag = 'input window, operand 1, single buffered']
    #allocation6 [shape = 's32[1]{0}', space=sflag, size = 0x4, scoped, tag = 'scoped memory for tpu_custom_call.1']
    #allocation7 [shape = 'u8[512]{0}', space=vmem, size = 0x400, scoped, tag = 'input window, operand 2, single buffered']
    #allocation8 [shape = 'u8[2048]{0}', space=vmem, size = 0x800, scoped, tag = 'input window, operand 3']
    #allocation9 [shape = 's32[2]{0}', space=sflag, size = 0x8, scoped, tag = 'scoped memory for tpu_custom_call.1']
    #allocation10 [shape = 'u8[2048]{0}', space=vmem, size = 0x800, scoped, tag = 'input window, operand 4']
    #allocation11 [shape = 'u8[16384]{0}', space=vmem, size = 0x4000, scoped, tag = 'output window, operand 0']
    #allocation12 [shape = 'u8[16384]{0}', space=vmem, size = 0x4000, scoped, tag = 'output window, operand 1']
    #allocation13 [shape = 's32[2]{0}', space=sflag, size = 0x8, scoped, tag = 'scoped memory for tpu_custom_call.1']
    %13 = vsyncpa [#allocation3], 0
    %14 = vsyncpa [#allocation6], 0
    %15 = vsyncpa [#allocation9], 0
    %s16 = scalar_lea.sflag [#allocation9], 1
    %17 = vsyncpa %s16, 0
    %18 = vsyncpa [#allocation4], 0
    %s19 = scalar_lea.sflag [#allocation4], 1
    %20 = vsyncpa %s19, 0
    %21 = vsyncpa [#allocation13], 0
    %s22 = scalar_lea.sflag [#allocation13], 1
    %23 = vsyncpa %s22, 0
    loop: start=0, step=1, limit=4
    $region2: #{tpu_custom_call.1} parent=1 // loop_pre_header
      _
    $region3: #{tpu_custom_call.1} parent=1 // loop_header
      %s25 = sphi 0, %s29
      %p26 = scmp.ge.s32.totalorder %s25, 4
      %s32 = sphi 0, %s44
      %s33 = sphi 0, %s40
      %s34 = sphi 0, %s32
      %s35 = sphi 0, %s33
      %s36 = sphi 0, %s34
      %s37 = sphi 0, %s35
      %s47 = sphi 0, %s49
      %s50 = sphi 0, %s47
      %s51 = sphi 0, %s50
      %s67 = sphi 0, %s51
      %s71 = sphi 0, %s71
      %s73 = sphi 0, %s71
      %s74 = sphi 0, %s73
      %s88 = sphi 0, %s74
      %s92 = sphi 0, %s92
      %s94 = sphi 0, %s92
      %s95 = sphi 0, %s94
      %s109 = sphi 0, %s95
      %s115 = sphi 0, %s117
      %s118 = sphi 0, %s115
      %s119 = sphi 0, %s118
      %s135 = sphi 0, %s119
      %s141 = sphi 0, %s143
      %s144 = sphi 0, %s141
      %s145 = sphi 0, %s144
      %s161 = sphi 0, %s145
      %s167 = sphi 0, %s169
      %s170 = sphi 0, %s167
      %s171 = sphi 0, %s170
      %s187 = sphi 0, %s171
      %s195 = sphi 0, %s197
      %s198 = sphi 0, %s195
      %s199 = sphi 0, %s198
      %s215 = sphi 0, %s199
      %s223 = sphi 0, %s225
      %s226 = sphi 0, %s223
      %s227 = sphi 0, %s226
      %s243 = sphi 0, %s227
    $region4: #{tpu_custom_call.1} parent=1 // loop_header_branch
      %28 = sbr.rel (%p26) target = $region8
    $region5: #{tpu_custom_call.1} parent=1 // loop_body
      %s30 = ssub.s32 %s25, 1
      %s31 = ssub.s32 %s25, 2
      %s38 = sadd.s32 1, %s33
      %p39 = scmp.ge.s32.totalorder %s38, 2
      %s40 = scalar_select %p39, 0, %s38
      %s41 = sadd.s32 1, %s32
      %s42 = scalar_select %p39, %s41, %s32
      %p43 = scmp.ge.s32.totalorder %s42, 1
      %s44 = scalar_select %p43, 0, %s42
      %s45 = ssub.s32 %s32, %s44
      %p46 = scmp.eq.s32.totalorder %s45, 0
      %s48 = sadd.s32 %s47, 1
      %s49 = scalar_select %p46, %s47, %s48
      %p52 = pneg %p46
      %p53 = scmp.eq.s32.totalorder %s25, 1
      %p54 = por %p52, %p53
      %p55 = scmp.ne.s32.totalorder %s47, %s50
      %p56 = scmp.eq.s32.totalorder %s25, 0
      %p57 = por %p55, %p56
      %p58 = scmp.ne.s32.totalorder %s47, %s50
      %p59 = scmp.eq.s32.totalorder %s30, 1
      %p60 = por %p58, %p59
      %p61 = scmp.ne.s32.totalorder %s50, %s51
      %p62 = scmp.eq.s32.totalorder %s30, 0
      %p63 = por %p61, %p62
      %p64 = scmp.ne.s32.totalorder %s50, %s51
      %p65 = scmp.eq.s32.totalorder %s31, 1
      %p66 = por %p64, %p65
      %p68 = scmp.ne.s32.totalorder %s51, %s67
      %p69 = scmp.eq.s32.totalorder %s31, 0
      %p70 = por %p68, %p69
      %s72 = sadd.s32 %s71, 1
      %p75 = scmp.eq.s32.totalorder %s25, 1
      %p76 = scmp.ne.s32.totalorder %s71, %s73
      %p77 = scmp.eq.s32.totalorder %s25, 0
      %p78 = por %p76, %p77
      %p79 = scmp.ne.s32.totalorder %s71, %s73
      %p80 = scmp.eq.s32.totalorder %s30, 1
      %p81 = por %p79, %p80
      %p82 = scmp.ne.s32.totalorder %s73, %s74
      %p83 = scmp.eq.s32.totalorder %s30, 0
      %p84 = por %p82, %p83
      %p85 = scmp.ne.s32.totalorder %s73, %s74
      %p86 = scmp.eq.s32.totalorder %s31, 1
      %p87 = por %p85, %p86
      %p89 = scmp.ne.s32.totalorder %s74, %s88
      %p90 = scmp.eq.s32.totalorder %s31, 0
      %p91 = por %p89, %p90
      %s93 = sadd.s32 %s92, 1
      %p96 = scmp.eq.s32.totalorder %s25, 1
      %p97 = scmp.ne.s32.totalorder %s92, %s94
      %p98 = scmp.eq.s32.totalorder %s25, 0
      %p99 = por %p97, %p98
      %p100 = scmp.ne.s32.totalorder %s92, %s94
      %p101 = scmp.eq.s32.totalorder %s30, 1
      %p102 = por %p100, %p101
      %p103 = scmp.ne.s32.totalorder %s94, %s95
      %p104 = scmp.eq.s32.totalorder %s30, 0
      %p105 = por %p103, %p104
      %p106 = scmp.ne.s32.totalorder %s94, %s95
      %p107 = scmp.eq.s32.totalorder %s31, 1
      %p108 = por %p106, %p107
      %p110 = scmp.ne.s32.totalorder %s95, %s109
      %p111 = scmp.eq.s32.totalorder %s31, 0
      %p112 = por %p110, %p111
      %s113 = ssub.s32 %s33, %s40
      %p114 = scmp.eq.s32.totalorder %s113, 0
      %s116 = sadd.s32 %s115, 1
      %s117 = scalar_select %p114, %s115, %s116
      %p120 = pneg %p114
      %p121 = scmp.eq.s32.totalorder %s25, 1
      %p122 = por %p120, %p121
      %p123 = scmp.ne.s32.totalorder %s115, %s118
      %p124 = scmp.eq.s32.totalorder %s25, 0
      %p125 = por %p123, %p124
      %p126 = scmp.ne.s32.totalorder %s115, %s118
      %p127 = scmp.eq.s32.totalorder %s30, 1
      %p128 = por %p126, %p127
      %p129 = scmp.ne.s32.totalorder %s118, %s119
      %p130 = scmp.eq.s32.totalorder %s30, 0
      %p131 = por %p129, %p130
      %p132 = scmp.ne.s32.totalorder %s118, %s119
      %p133 = scmp.eq.s32.totalorder %s31, 1
      %p134 = por %p132, %p133
      %p136 = scmp.ne.s32.totalorder %s119, %s135
      %p137 = scmp.eq.s32.totalorder %s31, 0
      %p138 = por %p136, %p137
      %s139 = ssub.s32 %s33, %s40
      %p140 = scmp.eq.s32.totalorder %s139, 0
      %s142 = sadd.s32 %s141, 1
      %s143 = scalar_select %p140, %s141, %s142
      %p146 = pneg %p140
      %p147 = scmp.eq.s32.totalorder %s25, 1
      %p148 = por %p146, %p147
      %p149 = scmp.ne.s32.totalorder %s141, %s144
      %p150 = scmp.eq.s32.totalorder %s25, 0
      %p151 = por %p149, %p150
      %p152 = scmp.ne.s32.totalorder %s141, %s144
      %p153 = scmp.eq.s32.totalorder %s30, 1
      %p154 = por %p152, %p153
      %p155 = scmp.ne.s32.totalorder %s144, %s145
      %p156 = scmp.eq.s32.totalorder %s30, 0
      %p157 = por %p155, %p156
      %p158 = scmp.ne.s32.totalorder %s144, %s145
      %p159 = scmp.eq.s32.totalorder %s31, 1
      %p160 = por %p158, %p159
      %p162 = scmp.ne.s32.totalorder %s145, %s161
      %p163 = scmp.eq.s32.totalorder %s31, 0
      %p164 = por %p162, %p163
      %s165 = ssub.s32 %s33, %s40
      %p166 = scmp.eq.s32.totalorder %s165, 0
      %s168 = sadd.s32 %s167, 1
      %s169 = scalar_select %p166, %s167, %s168
      %p172 = pneg %p166
      %p173 = scmp.eq.s32.totalorder %s25, 1
      %p174 = por %p172, %p173
      %p175 = scmp.ne.s32.totalorder %s167, %s170
      %p176 = scmp.eq.s32.totalorder %s25, 0
      %p177 = por %p175, %p176
      %p178 = scmp.ne.s32.totalorder %s167, %s170
      %p179 = scmp.eq.s32.totalorder %s30, 1
      %p180 = por %p178, %p179
      %p181 = scmp.ne.s32.totalorder %s170, %s171
      %p182 = scmp.eq.s32.totalorder %s30, 0
      %p183 = por %p181, %p182
      %p184 = scmp.ne.s32.totalorder %s170, %s171
      %p185 = scmp.eq.s32.totalorder %s31, 1
      %p186 = por %p184, %p185
      %p188 = scmp.ne.s32.totalorder %s171, %s187
      %p189 = scmp.eq.s32.totalorder %s31, 0
      %p190 = por %p188, %p189
      %s191 = ssub.s32 %s32, %s44
      %s192 = ssub.s32 %s33, %s40
      %s193 = sor.u32 %s191, %s192
      %p194 = scmp.eq.s32.totalorder %s193, 0
      %s196 = sadd.s32 %s195, 1
      %s197 = scalar_select %p194, %s195, %s196
      %p200 = pneg %p194
      %p201 = scmp.eq.s32.totalorder %s25, 1
      %p202 = por %p200, %p201
      %p203 = scmp.ne.s32.totalorder %s195, %s198
      %p204 = scmp.eq.s32.totalorder %s25, 0
      %p205 = por %p203, %p204
      %p206 = scmp.ne.s32.totalorder %s195, %s198
      %p207 = scmp.eq.s32.totalorder %s30, 1
      %p208 = por %p206, %p207
      %p209 = scmp.ne.s32.totalorder %s198, %s199
      %p210 = scmp.eq.s32.totalorder %s30, 0
      %p211 = por %p209, %p210
      %p212 = scmp.ne.s32.totalorder %s198, %s199
      %p213 = scmp.eq.s32.totalorder %s31, 1
      %p214 = por %p212, %p213
      %p216 = scmp.ne.s32.totalorder %s199, %s215
      %p217 = scmp.eq.s32.totalorder %s31, 0
      %p218 = por %p216, %p217
      %s219 = ssub.s32 %s32, %s44
      %s220 = ssub.s32 %s33, %s40
      %s221 = sor.u32 %s219, %s220
      %p222 = scmp.eq.s32.totalorder %s221, 0
      %s224 = sadd.s32 %s223, 1
      %s225 = scalar_select %p222, %s223, %s224
      %p228 = pneg %p222
      %p229 = scmp.eq.s32.totalorder %s25, 1
      %p230 = por %p228, %p229
      %p231 = scmp.ne.s32.totalorder %s223, %s226
      %p232 = scmp.eq.s32.totalorder %s25, 0
      %p233 = por %p231, %p232
      %p234 = scmp.ne.s32.totalorder %s223, %s226
      %p235 = scmp.eq.s32.totalorder %s30, 1
      %p236 = por %p234, %p235
      %p237 = scmp.ne.s32.totalorder %s226, %s227
      %p238 = scmp.eq.s32.totalorder %s30, 0
      %p239 = por %p237, %p238
      %p240 = scmp.ne.s32.totalorder %s226, %s227
      %p241 = scmp.eq.s32.totalorder %s31, 1
      %p242 = por %p240, %p241
      %p244 = scmp.ne.s32.totalorder %s227, %s243
      %p245 = scmp.eq.s32.totalorder %s31, 0
      %p246 = por %p244, %p245
      %p247 = scmp.le.s32.totalorder 1, %s25
      %p248 = scmp.lt.s32.totalorder %s25, 3
      %p249 = pnand %p247, %p248
      %p250 = pneg %p249
      // Predicated region
      $region9: #{tpu_custom_call.1} parent=5 // pred_check
        _
      $region10: #{tpu_custom_call.1} parent=5 // pred_check_branch
        %252 = sbr.rel (%p249) target = $region12
      $region11: #{tpu_custom_call.1} parent=5 // pred_region
        %s253 = ssub.s32 %s25, 1
        // Predicated region
        $region13: #{tpu_custom_call.1} parent=11 // pred_check
          %p254 = pneg %p63
        $region14: #{tpu_custom_call.1} parent=11 // pred_check_branch
          %256 = sbr.rel (%p254) target = $region16
        $region15: #{tpu_custom_call.1} parent=11 // pred_region
          %258 = vsyncadd [#allocation3], 0
          %s259 = smul.addr %s34, 8
          %s260 = scalar_lea.hbm %s0, %s259
          %s262 = sshll.u32 %s260, 4
          %s263 = int_to_ptr.hbm [resolvable:$true] %s262
          %s264 = sshll.u32 [#allocation2], 4
          %s265 = int_to_ptr.vmem [resolvable:$true] %s264
          %267 = dma.hbm_to_vmem [thread:$0]  %s263, 128, %s265, [#allocation3]
        $region16: #{tpu_custom_call.1} parent=11 // pred_fallthru
          _
        // Predicated region
        $region17: #{tpu_custom_call.1} parent=11 // pred_check
          %p268 = pneg %p84
        $region18: #{tpu_custom_call.1} parent=11 // pred_check_branch
          %270 = sbr.rel (%p268) target = $region20
        $region19: #{tpu_custom_call.1} parent=11 // pred_region
          %272 = vsyncadd [#allocation6], 0
          %s273 = sshll.u32 %s1, 4
          %s274 = int_to_ptr.hbm [resolvable:$true] %s273
          %s275 = sshll.u32 [#allocation5], 4
          %s276 = int_to_ptr.vmem [resolvable:$true] %s275
          %281 = dma.hbm_to_vmem [thread:$0]  %s274, 512, %s276, [#allocation6], 128, 128, 8
        $region20: #{tpu_custom_call.1} parent=11 // pred_fallthru
          _
        // Predicated region
        $region21: #{tpu_custom_call.1} parent=11 // pred_check
          %p282 = pneg %p105
        $region22: #{tpu_custom_call.1} parent=11 // pred_check_branch
          %284 = sbr.rel (%p282) target = $region24
        $region23: #{tpu_custom_call.1} parent=11 // pred_region
          %286 = vsyncadd [#allocation6], 0
          %s288 = sshll.u32 %s2, 4
          %s289 = int_to_ptr.hbm [resolvable:$true] %s288
          %s290 = sshll.u32 [#allocation7], 4
          %s291 = int_to_ptr.vmem [resolvable:$true] %s290
          %293 = dma.hbm_to_vmem [thread:$0]  %s289, 16, %s291, [#allocation6]
        $region24: #{tpu_custom_call.1} parent=11 // pred_fallthru
          _
      $region12: #{tpu_custom_call.1} parent=5 // pred_fallthru
        _
      %p294 = scmp.lt.s32.totalorder %s25, 2
      // Predicated region
      $region25: #{tpu_custom_call.1} parent=5 // pred_check
        %p295 = pneg %p294
      $region26: #{tpu_custom_call.1} parent=5 // pred_check_branch
        %297 = sbr.rel (%p295) target = $region28
      $region27: #{tpu_custom_call.1} parent=5 // pred_region
        // Predicated region
        $region29: #{tpu_custom_call.1} parent=27 // pred_check
          %p298 = pneg %p125
        $region30: #{tpu_custom_call.1} parent=27 // pred_check_branch
          %300 = sbr.rel (%p298) target = $region32
        $region31: #{tpu_custom_call.1} parent=27 // pred_region
          %s301 = sand.u32 %s25, 1
          %s302 = scalar_lea.sflag [#allocation9], %s301
          %s303 = sand.u32 %s115, 1
          %s304 = smul.addr %s303, 2
          %s305 = scalar_lea.vmem [#allocation8], %s304
          %s306 = smul.u32 2, %s33
          %308 = vsyncadd %s302, 0
          %s309 = scalar_lea.hbm %s3, %s306
          %s311 = sshll.u32 %s309, 4
          %s312 = int_to_ptr.hbm [resolvable:$true] %s311
          %s313 = sshll.u32 %s305, 4
          %s314 = int_to_ptr.vmem [resolvable:$true] %s313
          %316 = dma.hbm_to_vmem [thread:$0]  %s312, 32, %s314, %s302
        $region32: #{tpu_custom_call.1} parent=27 // pred_fallthru
          _
        // Predicated region
        $region33: #{tpu_custom_call.1} parent=27 // pred_check
          %p317 = pneg %p151
        $region34: #{tpu_custom_call.1} parent=27 // pred_check_branch
          %319 = sbr.rel (%p317) target = $region36
        $region35: #{tpu_custom_call.1} parent=27 // pred_region
          %s320 = sand.u32 %s25, 1
          %s321 = scalar_lea.sflag [#allocation9], %s320
          %s322 = sand.u32 %s141, 1
          %s323 = smul.addr %s322, 2
          %s324 = scalar_lea.vmem [#allocation10], %s323
          %s325 = smul.u32 2, %s33
          %327 = vsyncadd %s321, 0
          %s328 = scalar_lea.hbm %s4, %s325
          %s330 = sshll.u32 %s328, 4
          %s331 = int_to_ptr.hbm [resolvable:$true] %s330
          %s332 = sshll.u32 %s324, 4
          %s333 = int_to_ptr.vmem [resolvable:$true] %s332
          %335 = dma.hbm_to_vmem [thread:$0]  %s331, 32, %s333, %s321
        $region36: #{tpu_custom_call.1} parent=27 // pred_fallthru
          _
        // Predicated region
        $region37: #{tpu_custom_call.1} parent=27 // pred_check
          %p336 = pneg %p177
        $region38: #{tpu_custom_call.1} parent=27 // pred_check_branch
          %338 = sbr.rel (%p336) target = $region40
        $region39: #{tpu_custom_call.1} parent=27 // pred_region
          %s339 = smul.u32 2, %s33
          %p340 = scmp.lt.s32.totalorder %s339, 3
          %s341 = scalar_select %p340, %s339, 3
          %s342 = scalar_lea.vmem %s5, %s341
          %s343 = smul.u32 2, %s33
        $region40: #{tpu_custom_call.1} parent=27 // pred_fallthru
          _
      $region28: #{tpu_custom_call.1} parent=5 // pred_fallthru
        _
      %p344 = scmp.le.s32.totalorder 1, %s25
      %p345 = scmp.lt.s32.totalorder %s25, 3
      %p346 = pnand %p344, %p345
      %p347 = pneg %p346
      // Predicated region
      $region41: #{tpu_custom_call.1} parent=5 // pred_check
        _
      $region42: #{tpu_custom_call.1} parent=5 // pred_check_branch
        %349 = sbr.rel (%p346) target = $region44
      $region43: #{tpu_custom_call.1} parent=5 // pred_region
        %s350 = ssub.s32 %s25, 1
        // Predicated region
        $region45: #{tpu_custom_call.1} parent=43 // pred_check
          %p351 = pneg %p63
        $region46: #{tpu_custom_call.1} parent=43 // pred_check_branch
          %353 = sbr.rel (%p351) target = $region48
        $region47: #{tpu_custom_call.1} parent=43 // pred_region
          %355 = dma.done [#allocation3], 128
        $region48: #{tpu_custom_call.1} parent=43 // pred_fallthru
          _
        // Predicated region
        $region49: #{tpu_custom_call.1} parent=43 // pred_check
          %p356 = pneg %p84
        $region50: #{tpu_custom_call.1} parent=43 // pred_check_branch
          %358 = sbr.rel (%p356) target = $region52
        $region51: #{tpu_custom_call.1} parent=43 // pred_region
          %360 = dma.done [#allocation6], 512
        $region52: #{tpu_custom_call.1} parent=43 // pred_fallthru
          _
        // Predicated region
        $region53: #{tpu_custom_call.1} parent=43 // pred_check
          %p361 = pneg %p105
        $region54: #{tpu_custom_call.1} parent=43 // pred_check_branch
          %363 = sbr.rel (%p361) target = $region56
        $region55: #{tpu_custom_call.1} parent=43 // pred_region
          %365 = dma.done [#allocation6], 16
        $region56: #{tpu_custom_call.1} parent=43 // pred_fallthru
          _
        %s366 = sand.u32 %s30, 1
        %s367 = scalar_lea.sflag [#allocation9], %s366
        %s368 = sand.u32 %s118, 1
        %s369 = smul.addr %s368, 2
        %s370 = scalar_lea.vmem [#allocation8], %s369
        // Predicated region
        $region57: #{tpu_custom_call.1} parent=43 // pred_check
          %p371 = pneg %p131
        $region58: #{tpu_custom_call.1} parent=43 // pred_check_branch
          %373 = sbr.rel (%p371) target = $region60
        $region59: #{tpu_custom_call.1} parent=43 // pred_region
          %375 = dma.done %s367, 32
        $region60: #{tpu_custom_call.1} parent=43 // pred_fallthru
          _
        %s376 = sand.u32 %s30, 1
        %s377 = scalar_lea.sflag [#allocation9], %s376
        %s378 = sand.u32 %s144, 1
        %s379 = smul.addr %s378, 2
        %s380 = scalar_lea.vmem [#allocation10], %s379
        // Predicated region
        $region61: #{tpu_custom_call.1} parent=43 // pred_check
          %p381 = pneg %p157
        $region62: #{tpu_custom_call.1} parent=43 // pred_check_branch
          %383 = sbr.rel (%p381) target = $region64
        $region63: #{tpu_custom_call.1} parent=43 // pred_region
          %385 = dma.done %s377, 32
        $region64: #{tpu_custom_call.1} parent=43 // pred_fallthru
          _
        %p386 = pneg %p63
        %p387 = pneg %p60
        %p388 = pneg %p84
        %p389 = pneg %p81
        %p390 = pneg %p105
        %p391 = pneg %p102
        %s392 = sand.u32 %s30, 1
        %s393 = scalar_lea.sflag [#allocation9], %s392
        %s394 = sand.u32 %s118, 1
        %s395 = smul.addr %s394, 2
        %s396 = scalar_lea.vmem [#allocation8], %s395
        %p397 = pneg %p131
        %p398 = pneg %p128
        %s399 = sand.u32 %s30, 1
        %s400 = scalar_lea.sflag [#allocation9], %s399
        %s401 = sand.u32 %s144, 1
        %s402 = smul.addr %s401, 2
        %s403 = scalar_lea.vmem [#allocation10], %s402
        %p404 = pneg %p157
        %p405 = pneg %p154
        %s406 = smul.u32 2, %s35
        %p407 = scmp.lt.s32.totalorder %s406, 3
        %s408 = scalar_select %p407, %s406, 3
        %s409 = scalar_lea.vmem %s5, %s408
        %p410 = pneg %p183
        %p411 = pneg %p180
        %p412 = pneg %p211
        %p413 = pneg %p208
        %s414 = sand.u32 %s198, 1
        %s415 = scalar_lea.sflag [#allocation4], %s414
        %s416 = sand.u32 %s198, 1
        %s417 = smul.addr %s416, 16
        %s418 = scalar_lea.vmem [#allocation11], %s417
        %p419 = pneg %p239
        %p420 = pneg %p236
        %s421 = sand.u32 %s226, 1
        %s422 = scalar_lea.sflag [#allocation13], %s421
        %s423 = sand.u32 %s226, 1
        %s424 = smul.addr %s423, 16
        %s425 = scalar_lea.vmem [#allocation12], %s424
        %s426 = smul.u32 2, %s35
        %s427 = smul.u32 2, %s35
        %s428 = smul.u32 2, %s35
        %p429 = scmp.lt.s32.totalorder %s428, 3
        %s430 = scalar_select %p429, %s428, 3
        %s431 = scalar_lea.vmem %s5, %s430
        %s432 = smul.u32 2, %s35
        %s433 = smul.u32 2, %s35
        %s434 = smul.u32 2, %s35
        %v435 = vld [vmem:[#allocation2] sm:$0xff]
        %v436 = vld [vmem:[#allocation5] sm:$0xff]
        %v437 = vld [vmem:[#allocation5 + $0x8] sm:$0xff]
        %v438 = vld [vmem:[#allocation5 + $0x10] sm:$0xff]
        %v439 = vld [vmem:[#allocation5 + $0x18] sm:$0xff]
        %v440 = vld [vmem:[#allocation7] sm:$0x1]
        %v442 = vperm.slane %v440, 0
        %vm444 = vcmask 261120
        %v446 = vsel %vm444, %v435, 0
        %448 = vmatpush.msra.mxu0 0.0
        %449 = vmatpush.msra.mxu0 0.0
        %450 = vmatpush.msra.mxu0 0.0
        %451 = vmatpush.msra.mxu0 0.0
        %452 = vmatpush.msra.mxu0 0.0
        %453 = vmatpush.msra.mxu0 0.0
        %454 = vmatpush.msra.mxu0 0.0
        %455 = vmatpush.msra.mxu0 0.0
        %456 = vmatpush.msra.mxu0 0.0
        %457 = vmatpush.msra.mxu0 0.0
        %458 = vmatpush.msra.mxu0 0.0
        %459 = vmatpush.msra.mxu0 0.0
        %460 = vmatpush.msra.mxu0 %v439
        %461 = vmatpush.msra.mxu0 %v438
        %462 = vmatpush.msra.mxu0 %v437
        %463 = vmatpush.msra.mxu0 %v436
        %464 = vmatmul.f32.gmra.mxu0 %v446
        %v465 = vpop.f32.mrf.mxu0
        %v466 = vadd.f32 %v442, %v465
        %467 = vdwg.mxu0
        %v468 = vxor.u32 %v466, 2147483648
        %v469 = vmul.f32 %v468, 1.442695
        %v470 = vpow.pop %v469
        %v471 = vadd.f32 %v470, 1.0
        %v472 = vrcp.pop %v471
        %v473 = vmul.f32 %v471, %v472
        %v474 = vsub.f32 1.0, %v473
        %v475 = vmul.f32 %v472, %v474
        %v476 = vadd.f32 %v472, %v475
        %vm477 = vweird.f32 %v471
        %vm478 = vweird.f32 %v472
        %vm479 = vmor %vm477, %vm478
        %v480 = vsel %vm479, %v472, %v476
        %v481 = vand.u32 2147483647, %v471
        %vm482 = vcmp.eq.f32.partialorder %v481, 8.507059e+37
        %v483 = vand.u32 %v471, 2147483648
        %v484 = vor.u32 1.1754944e-38, %v483
        %v485 = vsel %vm482, %v484, %v480
        %v486 = vmul.f32 1.0, %v485
        %487 = vrot.lane.b32.xlu0 %v435, 32
        %v488 = vpop.permute.xlu0 %487
        %v490 = vsel %vm444, %v435, %v488
        %492 = vrot.lane.b32.xlu0 %v490, 64
        %v493 = vpop.permute.xlu0 %492
        %vm495 = vcmask 523264
        %v496 = vsel %vm495, %v490, %v493
        %498 = vrot.lane.b32.xlu0 %v466, 32
        %v499 = vpop.permute.xlu0 %498
        %v501 = vsel %vm444, %v466, %v499
        %503 = vrot.lane.b32.xlu0 %v501, 64
        %v504 = vpop.permute.xlu0 %503
        %v506 = vsel %vm495, %v501, %v504
        %508 = vrot.lane.b32.xlu0 %v486, 32
        %v509 = vpop.permute.xlu0 %508
        %v511 = vsel %vm444, %v486, %v509
        %513 = vrot.lane.b32.xlu0 %v511, 64
        %v514 = vpop.permute.xlu0 %513
        %v516 = vsel %vm495, %v511, %v514
        %v517 = vld [vmem:[%s370] sm:$0x3]
        %v518 = vld [vmem:[%s380] sm:$0x3]
        %v519 = vld [vmem:[%s431] sm:$0x3]
        %v521 = vperm.slane %v518, 0
        %v522 = vperm.slane %v518, 1
        %v525 = vmul.f32 %v521, %v506
        %v526 = vmul.f32 %v522, %v506
        %v527 = vadd.f32 %v496, %v525
        %v528 = vadd.f32 %v496, %v526
        %529 = vst [vmem:[%s418] sm:$0xff] %v527
        %530 = vst [vmem:[%s418 + $0x8] sm:$0xff] %v528
        %v532 = vperm.slane %v519, 0
        %v533 = vperm.slane %v519, 1
        %v536 = vadd.f32 %v532, %v516
        %v537 = vadd.f32 %v533, %v516
        %v539 = vperm.slane %v517, 0
        %v540 = vperm.slane %v517, 1
        %v543 = vmul.f32 %v539, %v536
        %v544 = vmul.f32 %v540, %v537
        %545 = vst [vmem:[%s425] sm:$0xff] %v543
        %546 = vst [vmem:[%s425 + $0x8] sm:$0xff] %v544
        %s547 = sand.u32 %s198, 1
        %s548 = scalar_lea.sflag [#allocation4], %s547
        %s549 = sand.u32 %s198, 1
        %s550 = smul.addr %s549, 16
        %s551 = scalar_lea.vmem [#allocation11], %s550
        %s552 = sand.u32 %s226, 1
        %s553 = scalar_lea.sflag [#allocation13], %s552
        %s554 = sand.u32 %s226, 1
        %s555 = smul.addr %s554, 16
        %s556 = scalar_lea.vmem [#allocation12], %s555
        // Predicated region
        $region65: #{tpu_custom_call.1} parent=43 // pred_check
          %p557 = pneg %p208
        $region66: #{tpu_custom_call.1} parent=43 // pred_check_branch
          %559 = sbr.rel (%p557) target = $region68
        $region67: #{tpu_custom_call.1} parent=43 // pred_region
          %s560 = smul.u32 2, %s35
          %562 = vsyncadd %s548, 0
          %s563 = smul.addr %s34, 4
          %s564 = sadd.s32 %s560, %s563
          %s565 = smul.addr %s564, 8
          %s566 = scalar_lea.hbm %s6, %s565
          %s568 = sshll.u32 %s551, 4
          %s569 = int_to_ptr.vmem [resolvable:$true] %s568
          %s570 = sshll.u32 %s566, 4
          %s571 = int_to_ptr.hbm [resolvable:$true] %s570
          %573 = dma.vmem_to_hbm [thread:$0]  %s569, 256, %s571, %s548
        $region68: #{tpu_custom_call.1} parent=43 // pred_fallthru
          _
        // Predicated region
        $region69: #{tpu_custom_call.1} parent=43 // pred_check
          %p574 = pneg %p236
        $region70: #{tpu_custom_call.1} parent=43 // pred_check_branch
          %576 = sbr.rel (%p574) target = $region72
        $region71: #{tpu_custom_call.1} parent=43 // pred_region
          %s577 = smul.u32 2, %s35
          %579 = vsyncadd %s553, 0
          %s580 = smul.addr %s34, 4
          %s581 = sadd.s32 %s577, %s580
          %s582 = smul.addr %s581, 8
          %s583 = scalar_lea.hbm %s7, %s582
          %s585 = sshll.u32 %s556, 4
          %s586 = int_to_ptr.vmem [resolvable:$true] %s585
          %s587 = sshll.u32 %s583, 4
          %s588 = int_to_ptr.hbm [resolvable:$true] %s587
          %590 = dma.vmem_to_hbm [thread:$0]  %s586, 256, %s588, %s553
        $region72: #{tpu_custom_call.1} parent=43 // pred_fallthru
          _
      $region44: #{tpu_custom_call.1} parent=5 // pred_fallthru
        _
      %p591 = scmp.le.s32.totalorder 2, %s25
      // Predicated region
      $region73: #{tpu_custom_call.1} parent=5 // pred_check
        %p592 = pneg %p591
      $region74: #{tpu_custom_call.1} parent=5 // pred_check_branch
        %594 = sbr.rel (%p592) target = $region76
      $region75: #{tpu_custom_call.1} parent=5 // pred_region
        %s595 = ssub.s32 %s25, 2
        // Predicated region
        $region77: #{tpu_custom_call.1} parent=75 // pred_check
          %p596 = pneg %p214
        $region78: #{tpu_custom_call.1} parent=75 // pred_check_branch
          %598 = sbr.rel (%p596) target = $region80
        $region79: #{tpu_custom_call.1} parent=75 // pred_region
          %s599 = sand.u32 %s199, 1
          %s600 = scalar_lea.sflag [#allocation4], %s599
          %s601 = sand.u32 %s199, 1
          %s602 = smul.addr %s601, 16
          %s603 = scalar_lea.vmem [#allocation11], %s602
          %605 = dma.done %s600, 256
        $region80: #{tpu_custom_call.1} parent=75 // pred_fallthru
          _
        // Predicated region
        $region81: #{tpu_custom_call.1} parent=75 // pred_check
          %p606 = pneg %p242
        $region82: #{tpu_custom_call.1} parent=75 // pred_check_branch
          %608 = sbr.rel (%p606) target = $region84
        $region83: #{tpu_custom_call.1} parent=75 // pred_region
          %s609 = sand.u32 %s227, 1
          %s610 = scalar_lea.sflag [#allocation13], %s609
          %s611 = sand.u32 %s227, 1
          %s612 = smul.addr %s611, 16
          %s613 = scalar_lea.vmem [#allocation12], %s612
          %615 = dma.done %s610, 256
        $region84: #{tpu_custom_call.1} parent=75 // pred_fallthru
          _
      $region76: #{tpu_custom_call.1} parent=5 // pred_fallthru
        _
    $region6: #{tpu_custom_call.1} parent=1 // loop_footer
      %s29 = sadd.s32 1, %s25
    $region7: #{tpu_custom_call.1} parent=1 // loop_footer_branch
      %24 = sbr.rel target = $region3
    $region8: #{tpu_custom_call.1} parent=1 // loop_exit
      _
    %616 = vsyncpa [#allocation3], 1
    %s617 = scalar_lea.sflag [#allocation3], 1
    %618 = vsyncpa %s617, 1
    %619 = vsyncpa [#allocation6], 1
    %620 = vsyncpa [#allocation9], 1
    %s621 = scalar_lea.sflag [#allocation9], 1
    %622 = vsyncpa %s621, 1
    %623 = vsyncpa [#allocation4], 1
    %s624 = scalar_lea.sflag [#allocation4], 1
    %625 = vsyncpa %s624, 1
    %626 = vsyncpa [#allocation13], 1
    %s627 = scalar_lea.sflag [#allocation13], 1
    %628 = vsyncpa %s627, 1

</llo_original>
